<compile_context>
chip_gen: v5e
topology: v5e:2x2
jax: 0.10.0
libtpu: 0.0.40
codegen_flags: <defaults>
</compile_context>

<pallas_src>
import jax
import jax.numpy as jnp
from jax import lax
from jax.experimental import pallas as pl
from jax.experimental.pallas import tpu as pltpu


def _round_up(n, m):
    return ((n + m - 1) // m) * m


# ----------------------------------------------------------------------------
# Kernel (built per (F, Z, dtype) configuration via closure over static meta)
# ----------------------------------------------------------------------------
def _make_vae_kernel(layer_meta, z_dim, compute_dtype):
    """layer_meta: 8 static tuples (row0, out_dim, in_dim) into the packed
    slabs, in order enc1, enc2, enc3, enc_head(41|42), dec1, dec2, dec3,
    dec_head(41|42)."""

    def kernel(x_ref, eps_ref, w_ref, b_ref, lat_ref, rec_ref):
        def wb(idx):
            r0, out, fin = layer_meta[idx]
            return w_ref[r0:r0 + out, :fin], b_ref[r0:r0 + out, :]

        def lin_bm(idx, h_bm):
            # h_bm: (TILE_B, in) batch-major; the transpose is fused into the
            # MXU matmul via the contracting dims (no XLU transpose needed).
            w, b = wb(idx)
            return lax.dot_general(
                w, h_bm.astype(compute_dtype),
                dimension_numbers=(((1,), (1,)), ((), ())),
                preferred_element_type=jnp.float32) + b

        def lin_fm(idx, h_fm):
            # h_fm: (in, TILE_B) feature-major (batch on the 128-lane axis).
            w, b = wb(idx)
            return jnp.dot(w, h_fm.astype(compute_dtype),
                           preferred_element_type=jnp.float32) + b

        relu = lambda v: jnp.maximum(v, 0.0)

        # ---- encoder ----
        h1 = relu(lin_bm(0, x_ref[...]))          # (32, TB)
        h2 = relu(lin_fm(1, h1))                  # (32, TB)
        h3 = relu(lin_fm(2, h2))                  # (16, TB)

        head = lin_fm(3, h3)                      # (2Z, TB): [0:Z)=mu, [Z:2Z)=pre-sigmoid
        row = lax.broadcasted_iota(jnp.int32, head.shape, 0)
        lat = jnp.where(row < z_dim, head, jax.nn.sigmoid(head))
        lat_ref[...] = lat                        # single dense (2Z, TB) store

        latent_mu = lat[:z_dim, :]
        latent_logsigma = lat[z_dim:, :]

        # ---- reparametrization trick ----
        z = latent_mu + eps_ref[...] * jnp.exp(0.5 * latent_logsigma)

        # ---- decoder ----
        d1 = relu(lin_fm(4, z))                   # (16, TB)
        d2 = relu(lin_fm(5, d1))                  # (32, TB)
        d3 = relu(lin_fm(6, d2))                  # (32, TB)
        rec_ref[...] = lin_fm(7, d3)              # (2F, TB): [0:F)=mu, [F:2F)=logsigma

    return kernel


# ----------------------------------------------------------------------------
# Parameter packing: 10 (W, b) pairs -> two slabs + static layer metadata
# ----------------------------------------------------------------------------
_ROW_ALIGN = 16  # aligns row offsets for both f32 (8-row) and bf16 (16-row) tiles


def _pack_params(params, compute_dtype):
    (We1, b1), (We2, b2), (We3, b3), (We41, b41), (We42, b42), \
        (Wd1, c1), (Wd2, c2), (Wd3, c3), (Wd41, c41), (Wd42, c42) = params
    layers = [
        (We1, b1), (We2, b2), (We3, b3),
        (jnp.concatenate([We41, We42], 0), jnp.concatenate([b41, b42], 0)),
        (Wd1, c1), (Wd2, c2), (Wd3, c3),
        (jnp.concatenate([Wd41, Wd42], 0), jnp.concatenate([c41, c42], 0)),
    ]
    max_in = max(int(w.shape[1]) for w, _ in layers)
    meta, w_blocks, b_blocks, rows = [], [], [], 0
    for w, b in layers:
        out, fin = int(w.shape[0]), int(w.shape[1])
        meta.append((rows, out, fin))
        rpad = _round_up(out, _ROW_ALIGN)
        wp = jnp.zeros((rpad, max_in), jnp.float32).at[:out, :fin].set(
            w.astype(jnp.float32))
        bp = jnp.zeros((rpad, 1), jnp.float32).at[:out, 0].set(
            b.astype(jnp.float32))
        w_blocks.append(wp)
        b_blocks.append(bp)
        rows += rpad
    w_slab = jnp.concatenate(w_blocks, 0).astype(compute_dtype)
    b_slab = jnp.concatenate(b_blocks, 0)            # biases stay f32
    return w_slab, b_slab, tuple(meta)


# ----------------------------------------------------------------------------
# Host wrapper
# ----------------------------------------------------------------------------
def vae_forward(x, eps, params, *, use_bf16=False, target_cols=8192):
    """x: (B, F) f32 batch-major.  eps: (Z, B) f32, feature-major standard
    normal (torch.randn_like(std) equivalent; generated feature-major so no
    host relayout is needed).  params: 10 (W(out,in), b(out,)) pairs in
    PyTorch layer order.  Returns (reconstruction_mu, reconstruction_logsigma,
    latent_mu, latent_logsigma), batch-major, matching PyTorch forward()."""
    B, F = x.shape
    Z = eps.shape[0]
    assert eps.shape == (Z, B)

    compute_dtype = jnp.bfloat16 if use_bf16 else jnp.float32
    w_slab, b_slab, meta = _pack_params(params, compute_dtype)

    # --- batch tiling: choose the step count first, then a 128-aligned tile.
    steps = max(2, pl.cdiv(B, target_cols))
    if steps % 2:
        steps += 1                       # even grid -> both v7x TCs get work
    tile_b = _round_up(pl.cdiv(B, steps), 128)
    B_pad = _round_up(B, tile_b)
    grid = (B_pad // tile_b,)

    if B_pad != B:
        x = jnp.pad(x, ((0, B_pad - B), (0, 0)))
        eps = jnp.pad(eps, ((0, 0), (0, B_pad - B)))

    kernel = _make_vae_kernel(meta, Z, compute_dtype)

    const = lambda a: pl.BlockSpec(a.shape, lambda i: (0, 0))  # VMEM-resident
    in_specs = [
        pl.BlockSpec((tile_b, F), lambda i: (i, 0)),    # x, batch-major
        pl.BlockSpec((Z, tile_b), lambda i: (0, i)),    # eps, feature-major
        const(w_slab),
        const(b_slab),
    ]
    out_specs = [
        pl.BlockSpec((2 * Z, tile_b), lambda i: (0, i)),
        pl.BlockSpec((2 * F, tile_b), lambda i: (0, i)),
    ]
    out_shape = (jax.ShapeDtypeStruct((2 * Z, B_pad), jnp.float32),
                 jax.ShapeDtypeStruct((2 * F, B_pad), jnp.float32))

    flops = 2 * B_pad * sum(o * i for _, o, i in meta)
    io_bytes = (4 * B_pad * (F + Z + 2 * Z + 2 * F)
                + w_slab.size * w_slab.dtype.itemsize + b_slab.size * 4)
    cost = pl.CostEstimate(flops=int(flops),
                           transcendentals=int(3 * Z * B_pad),
                           bytes_accessed=int(io_bytes))

    lat, rec = pl.pallas_call(
        kernel,
        grid=grid,
        in_specs=in_specs,
        out_specs=out_specs,
        out_shape=out_shape,
        compiler_params=pltpu.CompilerParams(
            dimension_semantics=("parallel",)),          # batch tiles across TCs (v7x)
        cost_estimate=cost,
    )(x, eps, w_slab, b_slab)

    # Two host-side transposes total (one per consolidated slab), then slices.
    lat_bm = lat[:, :B].T            # (B, 2Z)
    rec_bm = rec[:, :B].T            # (B, 2F)
    return rec_bm[:, :F], rec_bm[:, F:], lat_bm[:, :Z], lat_bm[:, Z:]


# ----------------------------------------------------------------------------
# Parameter init (PyTorch nn.Linear layout: W (out, in), b (out,))
# ----------------------------------------------------------------------------
def init_linear(key, fan_in, fan_out):
    kw, kb = jax.random.split(key)
    bound = 1.0 / (fan_in ** 0.5)
    w = jax.random.uniform(kw, (fan_out, fan_in), jnp.float32, -bound, bound)
    b = jax.random.uniform(kb, (fan_out,), jnp.float32, -bound, bound)
    return w, b


def init_vae_params(key, feat_shape, dim_z):
    dims = [
        (feat_shape, 32),   # fc_enc_1
        (32, 32),           # fc_enc_2
        (32, 16),           # fc_enc_3
        (16, dim_z),        # fc_enc_41
        (16, dim_z),        # fc_enc_42
        (dim_z, 16),        # fc_dec_1
        (16, 32),           # fc_dec_2
        (32, 32),           # fc_dec_3
        (32, feat_shape),   # fc_dec_41
        (32, feat_shape),   # fc_dec_42
    ]
    keys = jax.random.split(key, len(dims))
    return [init_linear(k, fi, fo) for k, (fi, fo) in zip(keys, dims)]


# ----------------------------------------------------------------------------
# Pure-JAX reference (batch-major, matches PyTorch forward())
# ----------------------------------------------------------------------------
def vae_forward_ref(x, eps_bm, params):
    (We1, b1), (We2, b2), (We3, b3), (We41, b41), (We42, b42), \
        (Wd1, c1), (Wd2, c2), (Wd3, c3), (Wd41, c41), (Wd42, c42) = params
    relu = lambda v: jnp.maximum(v, 0.0)
    h1 = relu(x @ We1.T + b1)
    h2 = relu(h1 @ We2.T + b2)
    h3 = relu(h2 @ We3.T + b3)
    latent_mu = h3 @ We41.T + b41
    latent_logsigma = jax.nn.sigmoid(h3 @ We42.T + b42)
    z = latent_mu + eps_bm * jnp.exp(0.5 * latent_logsigma)
    d1 = relu(z @ Wd1.T + c1)
    d2 = relu(d1 @ Wd2.T + c2)
    d3 = relu(d2 @ Wd3.T + c3)
    return d3 @ Wd41.T + c41, d3 @ Wd42.T + c42, latent_mu, latent_logsigma


# ----------------------------------------------------------------------------
# Demo / sanity check
# ----------------------------------------------------------------------------
if __name__ == "__main__":
    # TODO(synk): training loop (Adam, KL + MSE loss), StandardScaler,
    # DataLoader and plotting/MetaSaver plumbing are host-side and not part of
    # the kernel; only forward() is implemented here.
    key = jax.random.PRNGKey(0)
    k_params, k_x, k_eps = jax.random.split(key, 3)

    batch = 64
    feat_shape = 8   # number of input features (columns of train_set)
    dim_z = 4        # latent dimension

    params = init_vae_params(k_params, feat_shape, dim_z)
    x = jax.random.normal(k_x, (batch, feat_shape), jnp.float32)
    eps = jax.random.normal(k_eps, (dim_z, batch), jnp.float32)  # feature-major randn

    refs = vae_forward_ref(x, eps.T, params)

    # f32 path (exact semantics, default; recommended on v5e): strict check.
    outs = jax.block_until_ready(vae_forward(x, eps, params, use_bf16=False))
    for o, r in zip(outs, refs):
        assert o.shape == r.shape and o.dtype == r.dtype
        assert float(jnp.max(jnp.abs(o - r))) < 1e-3

    # bf16-at-the-MXU fast path (v6e / v7x): f32 accumulation, relaxed check.
    outs_bf16 = jax.block_until_ready(vae_forward(x, eps, params, use_bf16=True))
    for o, r in zip(outs_bf16, refs):
        assert o.shape == r.shape
        assert float(jnp.max(jnp.abs(o - r))) < 2.5e-1

    print("KERNEL_OK")
</pallas_src>

<mosaic_0001>
module attributes {stable_mosaic.version = 11 : i64} {
  func.func @kernel(%arg0: i32, %arg1: memref<128x8xf32, #tpu.memory_space<vmem>>, %arg2: memref<4x128xf32, #tpu.memory_space<vmem>>, %arg3: memref<192x32xf32, #tpu.memory_space<vmem>>, %arg4: memref<192x1xf32, #tpu.memory_space<vmem>>, %arg5: memref<8x128xf32, #tpu.memory_space<vmem>>, %arg6: memref<16x128xf32, #tpu.memory_space<vmem>>) attributes {dimension_semantics = [#tpu.dimension_semantics<parallel>], iteration_bounds = array<i64: 1>, scalar_prefetch = 0 : i64, scratch_operands = 0 : i64, tpu.core_type = #tpu.core_type<tc>, window_params = [{transform_indices = @transform_0, window_bounds = array<i64: 128, 8>}, {transform_indices = @transform_1, window_bounds = array<i64: 4, 128>}, {pipeline_mode = #tpu.pipeline_mode<synchronous>, transform_indices = @transform_2, window_bounds = array<i64: 192, 32>}, {pipeline_mode = #tpu.pipeline_mode<synchronous>, transform_indices = @transform_3, window_bounds = array<i64: 192, 1>}, {transform_indices = @transform_4, window_bounds = array<i64: 8, 128>}, {transform_indices = @transform_5, window_bounds = array<i64: 16, 128>}]} {
    %c0 = arith.constant 0 : index
    %c0_0 = arith.constant 0 : index
    %0 = vector.load %arg1[%c0, %c0_0] : memref<128x8xf32, #tpu.memory_space<vmem>>, vector<128x8xf32>
    %c0_1 = arith.constant 0 : index
    %c0_2 = arith.constant 0 : index
    %1 = vector.load %arg3[%c0_1, %c0_2] : memref<192x32xf32, #tpu.memory_space<vmem>>, vector<32x8xf32>
    %c0_3 = arith.constant 0 : index
    %c0_4 = arith.constant 0 : index
    %2 = vector.load %arg4[%c0_3, %c0_4] : memref<192x1xf32, #tpu.memory_space<vmem>>, vector<32x1xf32>
    %cst = arith.constant dense<0.000000e+00> : vector<32x128xf32>
    %3 = tpu.matmul %1, %0, %cst {dimension_numbers = #tpu.dot_dimension_numbers<[1], [1], [0], [0], [0, 0, 1, 0], [], []>} : vector<32x8xf32>, vector<128x8xf32>, vector<32x128xf32> -> vector<32x128xf32>
    %4 = vector.broadcast %2 : vector<32x1xf32> to vector<32x128xf32>
    %5 = arith.addf %3, %4 : vector<32x128xf32>
    %cst_5 = arith.constant 0.000000e+00 : f32
    %6 = vector.broadcast %cst_5 : f32 to vector<32x128xf32>
    %7 = arith.maximumf %5, %6 : vector<32x128xf32>
    %c32 = arith.constant 32 : index
    %c0_6 = arith.constant 0 : index
    %8 = vector.load %arg3[%c32, %c0_6] : memref<192x32xf32, #tpu.memory_space<vmem>>, vector<32x32xf32>
    %c32_7 = arith.constant 32 : index
    %c0_8 = arith.constant 0 : index
    %9 = vector.load %arg4[%c32_7, %c0_8] : memref<192x1xf32, #tpu.memory_space<vmem>>, vector<32x1xf32>
    %cst_9 = arith.constant dense<0.000000e+00> : vector<32x128xf32>
    %10 = tpu.matmul %8, %7, %cst_9 {dimension_numbers = #tpu.dot_dimension_numbers<[1], [0], [0], [1], [0, 0, 1, 1], [], []>} : vector<32x32xf32>, vector<32x128xf32>, vector<32x128xf32> -> vector<32x128xf32>
    %11 = vector.broadcast %9 : vector<32x1xf32> to vector<32x128xf32>
    %12 = arith.addf %10, %11 : vector<32x128xf32>
    %cst_10 = arith.constant 0.000000e+00 : f32
    %13 = vector.broadcast %cst_10 : f32 to vector<32x128xf32>
    %14 = arith.maximumf %12, %13 : vector<32x128xf32>
    %c64 = arith.constant 64 : index
    %c0_11 = arith.constant 0 : index
    %15 = vector.load %arg3[%c64, %c0_11] : memref<192x32xf32, #tpu.memory_space<vmem>>, vector<16x32xf32>
    %c64_12 = arith.constant 64 : index
    %c0_13 = arith.constant 0 : index
    %16 = vector.load %arg4[%c64_12, %c0_13] : memref<192x1xf32, #tpu.memory_space<vmem>>, vector<16x1xf32>
    %cst_14 = arith.constant dense<0.000000e+00> : vector<16x128xf32>
    %17 = tpu.matmul %15, %14, %cst_14 {dimension_numbers = #tpu.dot_dimension_numbers<[1], [0], [0], [1], [0, 0, 1, 1], [], []>} : vector<16x32xf32>, vector<32x128xf32>, vector<16x128xf32> -> vector<16x128xf32>
    %18 = vector.broadcast %16 : vector<16x1xf32> to vector<16x128xf32>
    %19 = arith.addf %17, %18 : vector<16x128xf32>
    %cst_15 = arith.constant 0.000000e+00 : f32
    %20 = vector.broadcast %cst_15 : f32 to vector<16x128xf32>
    %21 = arith.maximumf %19, %20 : vector<16x128xf32>
    %c80 = arith.constant 80 : index
    %c0_16 = arith.constant 0 : index
    %22 = vector.load %arg3[%c80, %c0_16] : memref<192x32xf32, #tpu.memory_space<vmem>>, vector<8x16xf32>
    %c80_17 = arith.constant 80 : index
    %c0_18 = arith.constant 0 : index
    %23 = vector.load %arg4[%c80_17, %c0_18] : memref<192x1xf32, #tpu.memory_space<vmem>>, vector<8x1xf32>
    %cst_19 = arith.constant dense<0.000000e+00> : vector<8x128xf32>
    %24 = tpu.matmul %22, %21, %cst_19 {dimension_numbers = #tpu.dot_dimension_numbers<[1], [0], [0], [1], [0, 0, 1, 1], [], []>} : vector<8x16xf32>, vector<16x128xf32>, vector<8x128xf32> -> vector<8x128xf32>
    %25 = vector.broadcast %23 : vector<8x1xf32> to vector<8x128xf32>
    %26 = arith.addf %24, %25 : vector<8x128xf32>
    %27 = tpu.iota {dimensions = array<i32: 0>} : vector<8x128xi32>
    %c4_i32 = arith.constant 4 : i32
    %28 = vector.broadcast %c4_i32 : i32 to vector<8x128xi32>
    %29 = arith.cmpi slt, %27, %28 : vector<8x128xi32>
    %30 = arith.negf %26 : vector<8x128xf32>
    %31 = math.exp %30 : vector<8x128xf32>
    %cst_20 = arith.constant 1.000000e+00 : f32
    %32 = vector.broadcast %cst_20 : f32 to vector<8x128xf32>
    %33 = arith.addf %32, %31 : vector<8x128xf32>
    %34 = arith.divf %32, %33 : vector<8x128xf32>
    %35 = arith.select %29, %26, %34 : vector<8x128xi1>, vector<8x128xf32>
    %c0_21 = arith.constant 0 : index
    %c0_22 = arith.constant 0 : index
    %36 = vector.load %arg5[%c0_21, %c0_22] : memref<8x128xf32, #tpu.memory_space<vmem>>, vector<8x128xf32>
    tpu.vector_store %arg5[%c0_21, %c0_22], %35 {strides = array<i32>} : memref<8x128xf32, #tpu.memory_space<vmem>>, vector<8x128xf32>,
    %37 = vector.extract_strided_slice %35 {offsets = [0, 0], sizes = [4, 128], strides = [1, 1]} : vector<8x128xf32> to vector<4x128xf32>
    %38 = vector.extract_strided_slice %35 {offsets = [4, 0], sizes = [4, 128], strides = [1, 1]} : vector<8x128xf32> to vector<4x128xf32>
    %c0_23 = arith.constant 0 : index
    %c0_24 = arith.constant 0 : index
    %39 = vector.load %arg2[%c0_23, %c0_24] : memref<4x128xf32, #tpu.memory_space<vmem>>, vector<4x128xf32>
    %cst_25 = arith.constant 5.000000e-01 : f32
    %40 = vector.broadcast %cst_25 : f32 to vector<4x128xf32>
    %41 = arith.mulf %40, %38 : vector<4x128xf32>
    %42 = math.exp %41 : vector<4x128xf32>
    %43 = arith.mulf %39, %42 : vector<4x128xf32>
    %44 = arith.addf %37, %43 : vector<4x128xf32>
    %c96 = arith.constant 96 : index
    %c0_26 = arith.constant 0 : index
    %45 = vector.load %arg3[%c96, %c0_26] : memref<192x32xf32, #tpu.memory_space<vmem>>, vector<16x4xf32>
    %c96_27 = arith.constant 96 : index
    %c0_28 = arith.constant 0 : index
    %46 = vector.load %arg4[%c96_27, %c0_28] : memref<192x1xf32, #tpu.memory_space<vmem>>, vector<16x1xf32>
    %cst_29 = arith.constant dense<0.000000e+00> : vector<16x128xf32>
    %47 = tpu.matmul %45, %44, %cst_29 {dimension_numbers = #tpu.dot_dimension_numbers<[1], [0], [0], [1], [0, 0, 1, 1], [], []>} : vector<16x4xf32>, vector<4x128xf32>, vector<16x128xf32> -> vector<16x128xf32>
    %48 = vector.broadcast %46 : vector<16x1xf32> to vector<16x128xf32>
    %49 = arith.addf %47, %48 : vector<16x128xf32>
    %cst_30 = arith.constant 0.000000e+00 : f32
    %50 = vector.broadcast %cst_30 : f32 to vector<16x128xf32>
    %51 = arith.maximumf %49, %50 : vector<16x128xf32>
    %c112 = arith.constant 112 : index
    %c0_31 = arith.constant 0 : index
    %52 = vector.load %arg3[%c112, %c0_31] : memref<192x32xf32, #tpu.memory_space<vmem>>, vector<32x16xf32>
    %c112_32 = arith.constant 112 : index
    %c0_33 = arith.constant 0 : index
    %53 = vector.load %arg4[%c112_32, %c0_33] : memref<192x1xf32, #tpu.memory_space<vmem>>, vector<32x1xf32>
    %cst_34 = arith.constant dense<0.000000e+00> : vector<32x128xf32>
    %54 = tpu.matmul %52, %51, %cst_34 {dimension_numbers = #tpu.dot_dimension_numbers<[1], [0], [0], [1], [0, 0, 1, 1], [], []>} : vector<32x16xf32>, vector<16x128xf32>, vector<32x128xf32> -> vector<32x128xf32>
    %55 = vector.broadcast %53 : vector<32x1xf32> to vector<32x128xf32>
    %56 = arith.addf %54, %55 : vector<32x128xf32>
    %cst_35 = arith.constant 0.000000e+00 : f32
    %57 = vector.broadcast %cst_35 : f32 to vector<32x128xf32>
    %58 = arith.maximumf %56, %57 : vector<32x128xf32>
    %c144 = arith.constant 144 : index
    %c0_36 = arith.constant 0 : index
    %59 = vector.load %arg3[%c144, %c0_36] : memref<192x32xf32, #tpu.memory_space<vmem>>, vector<32x32xf32>
    %c144_37 = arith.constant 144 : index
    %c0_38 = arith.constant 0 : index
    %60 = vector.load %arg4[%c144_37, %c0_38] : memref<192x1xf32, #tpu.memory_space<vmem>>, vector<32x1xf32>
    %cst_39 = arith.constant dense<0.000000e+00> : vector<32x128xf32>
    %61 = tpu.matmul %59, %58, %cst_39 {dimension_numbers = #tpu.dot_dimension_numbers<[1], [0], [0], [1], [0, 0, 1, 1], [], []>} : vector<32x32xf32>, vector<32x128xf32>, vector<32x128xf32> -> vector<32x128xf32>
    %62 = vector.broadcast %60 : vector<32x1xf32> to vector<32x128xf32>
    %63 = arith.addf %61, %62 : vector<32x128xf32>
    %cst_40 = arith.constant 0.000000e+00 : f32
    %64 = vector.broadcast %cst_40 : f32 to vector<32x128xf32>
    %65 = arith.maximumf %63, %64 : vector<32x128xf32>
    %c176 = arith.constant 176 : index
    %c0_41 = arith.constant 0 : index
    %66 = vector.load %arg3[%c176, %c0_41] : memref<192x32xf32, #tpu.memory_space<vmem>>, vector<16x32xf32>
    %c176_42 = arith.constant 176 : index
    %c0_43 = arith.constant 0 : index
    %67 = vector.load %arg4[%c176_42, %c0_43] : memref<192x1xf32, #tpu.memory_space<vmem>>, vector<16x1xf32>
    %cst_44 = arith.constant dense<0.000000e+00> : vector<16x128xf32>
    %68 = tpu.matmul %66, %65, %cst_44 {dimension_numbers = #tpu.dot_dimension_numbers<[1], [0], [0], [1], [0, 0, 1, 1], [], []>} : vector<16x32xf32>, vector<32x128xf32>, vector<16x128xf32> -> vector<16x128xf32>
    %69 = vector.broadcast %67 : vector<16x1xf32> to vector<16x128xf32>
    %70 = arith.addf %68, %69 : vector<16x128xf32>
    %c0_45 = arith.constant 0 : index
    %c0_46 = arith.constant 0 : index
    %71 = vector.load %arg6[%c0_45, %c0_46] : memref<16x128xf32, #tpu.memory_space<vmem>>, vector<16x128xf32>
    tpu.vector_store %arg6[%c0_45, %c0_46], %70 {strides = array<i32>} : memref<16x128xf32, #tpu.memory_space<vmem>>, vector<16x128xf32>,
    return
  }
  func.func @transform_0(%arg0: i32) -> (i32, i32) {
    %c0_i32 = arith.constant 0 : i32
    %c0_i32_0 = arith.constant 0 : i32
    return %arg0, %c0_i32 : i32, i32
  }
  func.func @transform_1(%arg0: i32) -> (i32, i32) {
    %c0_i32 = arith.constant 0 : i32
    %c0_i32_0 = arith.constant 0 : i32
    return %c0_i32, %arg0 : i32, i32
  }
  func.func @transform_2(%arg0: i32) -> (i32, i32) {
    %c0_i32 = arith.constant 0 : i32
    %c0_i32_0 = arith.constant 0 : i32
    %c0_i32_1 = arith.constant 0 : i32
    return %c0_i32, %c0_i32_0 : i32, i32
  }
  func.func @transform_3(%arg0: i32) -> (i32, i32) {
    %c0_i32 = arith.constant 0 : i32
    %c0_i32_0 = arith.constant 0 : i32
    %c0_i32_1 = arith.constant 0 : i32
    return %c0_i32, %c0_i32_0 : i32, i32
  }
  func.func @transform_4(%arg0: i32) -> (i32, i32) {
    %c0_i32 = arith.constant 0 : i32
    %c0_i32_0 = arith.constant 0 : i32
    return %c0_i32, %arg0 : i32, i32
  }
  func.func @transform_5(%arg0: i32) -> (i32, i32) {
    %c0_i32 = arith.constant 0 : i32
    %c0_i32_0 = arith.constant 0 : i32
    return %c0_i32, %arg0 : i32, i32
  }
}

</mosaic_0001>

<llo_original>
// kernel: tpu_custom_call.1
$region0: #{tpu_custom_call.1}
  #allocation0 [shape = 'u32[]', space=smem, size = 0x4, offset = 0x4, fixed_abs, tag = 'smem constant byte address 0x4 - core index']
  #allocation1 [shape = 'u32[72,128]{1,0:T(1,128)}', space=vmem, size = 0x9000, scoped, tag = 'internal scratch']
  %s0 = inlined_call_operand.vmem [shape: f32[128,8], index: 0, kind: input, shape index: {}]
  %s1 = inlined_call_operand.vmem [shape: f32[4,128], index: 1, kind: input, shape index: {}]
  %s2 = inlined_call_operand.vmem [shape: f32[192,32], index: 2, kind: input, shape index: {}]
  %s3 = inlined_call_operand.vmem [shape: f32[192,1], index: 3, kind: input, shape index: {}]
  %s4 = inlined_call_operand.hbm [shape: f32[8,128], index: 4, kind: output, shape index: {0}]
  %s5 = inlined_call_operand.hbm [shape: f32[16,128], index: 5, kind: output, shape index: {1}]
  %6 = xla_tuple %s4, %s5
  %s7 = sld [smem:[#allocation0]]
  $region34: #{tpu_custom_call.1} parent=0
    _
  %s9 = ssub.s32 1, %s7
  %s10 = scalar_select 0, %s9, %s7
  $region1: #{tpu_custom_call.1} parent=0
    #allocation2 [shape = 'u8[4096]{0}', space=vmem, size = 0x1000, scoped, tag = 'output window, operand 0, single buffered']
    #allocation3 [shape = 's32[1]{0}', space=sflag, size = 0x4, scoped, tag = 'scoped memory for tpu_custom_call.1']
    #allocation4 [shape = 'u8[8192]{0}', space=vmem, size = 0x2000, scoped, tag = 'output window, operand 1, single buffered']
    #allocation5 [shape = 's32[1]{0}', space=sflag, size = 0x4, scoped, tag = 'scoped memory for tpu_custom_call.1']
    %11 = vsyncpa [#allocation3], 0
    %12 = vsyncpa [#allocation5], 0
    // Predicated region
    $region2: #{tpu_custom_call.1} parent=1 // pred_check
      _
    $region3: #{tpu_custom_call.1} parent=1 // pred_check_branch
      %14 = sbr.rel (0) target = $region5
    $region4: #{tpu_custom_call.1} parent=1 // pred_region
      _
    $region5: #{tpu_custom_call.1} parent=1 // pred_fallthru
      _
    // Predicated region
    $region6: #{tpu_custom_call.1} parent=1 // pred_check
      _
    $region7: #{tpu_custom_call.1} parent=1 // pred_check_branch
      %16 = sbr.rel (0) target = $region9
    $region8: #{tpu_custom_call.1} parent=1 // pred_region
      _
    $region9: #{tpu_custom_call.1} parent=1 // pred_fallthru
      _
    // Predicated region
    $region10: #{tpu_custom_call.1} parent=1 // pred_check
      _
    $region11: #{tpu_custom_call.1} parent=1 // pred_check_branch
      %18 = sbr.rel (0) target = $region13
    $region12: #{tpu_custom_call.1} parent=1 // pred_region
      _
    $region13: #{tpu_custom_call.1} parent=1 // pred_fallthru
      _
    // Predicated region
    $region14: #{tpu_custom_call.1} parent=1 // pred_check
      _
    $region15: #{tpu_custom_call.1} parent=1 // pred_check_branch
      %20 = sbr.rel (0) target = $region17
    $region16: #{tpu_custom_call.1} parent=1 // pred_region
      _
    $region17: #{tpu_custom_call.1} parent=1 // pred_fallthru
      _
    %v21 = vld [vmem:[%s0] sm:$0xff]
    %v22 = vld [vmem:[%s0 + $0x8] sm:$0xff]
    %v23 = vld [vmem:[%s0 + $0x10] sm:$0xff]
    %v24 = vld [vmem:[%s0 + $0x18] sm:$0xff]
    %v25 = vld [vmem:[%s0 + $0x20] sm:$0xff]
    %v26 = vld [vmem:[%s0 + $0x28] sm:$0xff]
    %v27 = vld [vmem:[%s0 + $0x30] sm:$0xff]
    %v28 = vld [vmem:[%s0 + $0x38] sm:$0xff]
    %v29 = vld [vmem:[%s0 + $0x40] sm:$0xff]
    %v30 = vld [vmem:[%s0 + $0x48] sm:$0xff]
    %v31 = vld [vmem:[%s0 + $0x50] sm:$0xff]
    %v32 = vld [vmem:[%s0 + $0x58] sm:$0xff]
    %v33 = vld [vmem:[%s0 + $0x60] sm:$0xff]
    %v34 = vld [vmem:[%s0 + $0x68] sm:$0xff]
    %v35 = vld [vmem:[%s0 + $0x70] sm:$0xff]
    %v36 = vld [vmem:[%s0 + $0x78] sm:$0xff]
    %v37 = vld [vmem:[%s2] sm:$0xff]
    %v38 = vld [vmem:[%s2 + $0x8] sm:$0xff]
    %v39 = vld [vmem:[%s2 + $0x10] sm:$0xff]
    %v40 = vld [vmem:[%s2 + $0x18] sm:$0xff]
    %v41 = vld [vmem:[%s3] sm:$0xff]
    %v42 = vld [vmem:[%s3 + $0x8] sm:$0xff]
    %v43 = vld [vmem:[%s3 + $0x10] sm:$0xff]
    %v44 = vld [vmem:[%s3 + $0x18] sm:$0xff]
    %46 = vset.pattern.permute.xlu0 0
    %47 = vperm.xlu0 %46, %v41
    %v48 = vpop.permute.xlu0 %47
    %51 = vset.pattern.permute.xlu0 0
    %52 = vperm.xlu0 %51, %v42
    %v53 = vpop.permute.xlu0 %52
    %56 = vset.pattern.permute.xlu0 0
    %57 = vperm.xlu0 %56, %v43
    %v58 = vpop.permute.xlu0 %57
    %61 = vset.pattern.permute.xlu0 0
    %62 = vperm.xlu0 %61, %v44
    %v63 = vpop.permute.xlu0 %62
    %vm65 = vcmask 64512
    %v67 = vsel %vm65, %v37, 0
    %v70 = vsel %vm65, %v38, 0
    %v73 = vsel %vm65, %v39, 0
    %v76 = vsel %vm65, %v40, 0
    %v79 = vsel %vm65, %v21, 0
    %v82 = vsel %vm65, %v22, 0
    %v85 = vsel %vm65, %v23, 0
    %v88 = vsel %vm65, %v24, 0
    %v91 = vsel %vm65, %v25, 0
    %v94 = vsel %vm65, %v26, 0
    %v97 = vsel %vm65, %v27, 0
    %v100 = vsel %vm65, %v28, 0
    %v103 = vsel %vm65, %v29, 0
    %v106 = vsel %vm65, %v30, 0
    %v109 = vsel %vm65, %v31, 0
    %v112 = vsel %vm65, %v32, 0
    %v115 = vsel %vm65, %v33, 0
    %v118 = vsel %vm65, %v34, 0
    %v121 = vsel %vm65, %v35, 0
    %v124 = vsel %vm65, %v36, 0
    %126 = vmatpush.xpose.msra.mxu0 %v124
    %127 = vmatpush.xpose.msra.mxu0 %v121
    %128 = vmatpush.xpose.msra.mxu0 %v118
    %129 = vmatpush.xpose.msra.mxu0 %v115
    %130 = vmatpush.xpose.msra.mxu0 %v112
    %131 = vmatpush.xpose.msra.mxu0 %v109
    %132 = vmatpush.xpose.msra.mxu0 %v106
    %133 = vmatpush.xpose.msra.mxu0 %v103
    %134 = vmatpush.xpose.msra.mxu0 %v100
    %135 = vmatpush.xpose.msra.mxu0 %v97
    %136 = vmatpush.xpose.msra.mxu0 %v94
    %137 = vmatpush.xpose.msra.mxu0 %v91
    %138 = vmatpush.xpose.msra.mxu0 %v88
    %139 = vmatpush.xpose.msra.mxu0 %v85
    %140 = vmatpush.xpose.msra.mxu0 %v82
    %141 = vmatpush.xpose.msra.mxu0 %v79
    %142 = vmatmul.f32.gmra.mxu0 %v67
    %v143 = vpop.f32.mrf.mxu0
    %v144 = vadd.f32 %v48, %v143
    %145 = vmatmul.f32.gmra.mxu0 %v70
    %v146 = vpop.f32.mrf.mxu0
    %v147 = vadd.f32 %v53, %v146
    %148 = vmatmul.f32.gmra.mxu0 %v73
    %v149 = vpop.f32.mrf.mxu0
    %v150 = vadd.f32 %v58, %v149
    %151 = vmatmul.f32.gmra.mxu0 %v76
    %v152 = vpop.f32.mrf.mxu0
    %v153 = vadd.f32 %v63, %v152
    %154 = vdwg.mxu0
    %v155 = vmax.f32 %v144, 0.0
    %v156 = vmax.f32 %v147, 0.0
    %v157 = vmax.f32 %v150, 0.0
    %v158 = vmax.f32 %v153, 0.0
    %v159 = vld [vmem:[%s2 + $0x20] sm:$0xff]
    %v160 = vld [vmem:[%s2 + $0x28] sm:$0xff]
    %v161 = vld [vmem:[%s2 + $0x30] sm:$0xff]
    %v162 = vld [vmem:[%s2 + $0x38] sm:$0xff]
    %v163 = vld [vmem:[%s3 + $0x20] sm:$0xff]
    %v164 = vld [vmem:[%s3 + $0x28] sm:$0xff]
    %v165 = vld [vmem:[%s3 + $0x30] sm:$0xff]
    %v166 = vld [vmem:[%s3 + $0x38] sm:$0xff]
    %168 = vset.pattern.permute.xlu0 0
    %169 = vperm.xlu0 %168, %v163
    %v170 = vpop.permute.xlu0 %169
    %173 = vset.pattern.permute.xlu0 0
    %174 = vperm.xlu0 %173, %v164
    %v175 = vpop.permute.xlu0 %174
    %178 = vset.pattern.permute.xlu0 0
    %179 = vperm.xlu0 %178, %v165
    %v180 = vpop.permute.xlu0 %179
    %183 = vset.pattern.permute.xlu0 0
    %184 = vperm.xlu0 %183, %v166
    %v185 = vpop.permute.xlu0 %184
    %vm187 = vcmask 261120
    %v189 = vsel %vm187, %v159, 0
    %v192 = vsel %vm187, %v160, 0
    %v195 = vsel %vm187, %v161, 0
    %v198 = vsel %vm187, %v162, 0
    %200 = vmatpush.msra.mxu0 0.0
    %201 = vmatpush.msra.mxu0 0.0
    %202 = vmatpush.msra.mxu0 0.0
    %203 = vmatpush.msra.mxu0 0.0
    %204 = vmatpush.msra.mxu0 0.0
    %205 = vmatpush.msra.mxu0 0.0
    %206 = vmatpush.msra.mxu0 0.0
    %207 = vmatpush.msra.mxu0 0.0
    %208 = vmatpush.msra.mxu0 0.0
    %209 = vmatpush.msra.mxu0 0.0
    %210 = vmatpush.msra.mxu0 0.0
    %211 = vmatpush.msra.mxu0 0.0
    %212 = vmatpush.msra.mxu0 %v158
    %213 = vmatpush.msra.mxu0 %v157
    %214 = vmatpush.msra.mxu0 %v156
    %215 = vmatpush.msra.mxu0 %v155
    %216 = vmatmul.f32.gmra.mxu0 %v189
    %v217 = vpop.f32.mrf.mxu0
    %v218 = vadd.f32 %v170, %v217
    %219 = vmatmul.f32.gmra.mxu0 %v192
    %v220 = vpop.f32.mrf.mxu0
    %v221 = vadd.f32 %v175, %v220
    %222 = vmatmul.f32.gmra.mxu0 %v195
    %v223 = vpop.f32.mrf.mxu0
    %v224 = vadd.f32 %v180, %v223
    %225 = vmatmul.f32.gmra.mxu0 %v198
    %v226 = vpop.f32.mrf.mxu0
    %v227 = vadd.f32 %v185, %v226
    %228 = vdwg.mxu0
    %v229 = vmax.f32 %v218, 0.0
    %v230 = vmax.f32 %v221, 0.0
    %v231 = vmax.f32 %v224, 0.0
    %v232 = vmax.f32 %v227, 0.0
    %v233 = vld [vmem:[%s2 + $0x40] sm:$0xff]
    %v234 = vld [vmem:[%s2 + $0x48] sm:$0xff]
    %v235 = vld [vmem:[%s3 + $0x40] sm:$0xff]
    %v236 = vld [vmem:[%s3 + $0x48] sm:$0xff]
    %238 = vset.pattern.permute.xlu0 0
    %239 = vperm.xlu0 %238, %v235
    %v240 = vpop.permute.xlu0 %239
    %243 = vset.pattern.permute.xlu0 0
    %244 = vperm.xlu0 %243, %v236
    %v245 = vpop.permute.xlu0 %244
    %v248 = vsel %vm187, %v233, 0
    %v251 = vsel %vm187, %v234, 0
    %253 = vmatpush.msra.mxu0 0.0
    %254 = vmatpush.msra.mxu0 0.0
    %255 = vmatpush.msra.mxu0 0.0
    %256 = vmatpush.msra.mxu0 0.0
    %257 = vmatpush.msra.mxu0 0.0
    %258 = vmatpush.msra.mxu0 0.0
    %259 = vmatpush.msra.mxu0 0.0
    %260 = vmatpush.msra.mxu0 0.0
    %261 = vmatpush.msra.mxu0 0.0
    %262 = vmatpush.msra.mxu0 0.0
    %263 = vmatpush.msra.mxu0 0.0
    %264 = vmatpush.msra.mxu0 0.0
    %265 = vmatpush.msra.mxu0 %v232
    %266 = vmatpush.msra.mxu0 %v231
    %267 = vmatpush.msra.mxu0 %v230
    %268 = vmatpush.msra.mxu0 %v229
    %269 = vmatmul.f32.gmra.mxu0 %v248
    %v270 = vpop.f32.mrf.mxu0
    %v271 = vadd.f32 %v240, %v270
    %272 = vmatmul.f32.gmra.mxu0 %v251
    %v273 = vpop.f32.mrf.mxu0
    %v274 = vadd.f32 %v245, %v273
    %275 = vdwg.mxu0
    %v276 = vmax.f32 %v271, 0.0
    %v277 = vmax.f32 %v274, 0.0
    %v278 = vld [vmem:[%s2 + $0x50] sm:$0xff]
    %v279 = vld [vmem:[%s3 + $0x50] sm:$0xff]
    %281 = vset.pattern.permute.xlu0 0
    %282 = vperm.xlu0 %281, %v279
    %v283 = vpop.permute.xlu0 %282
    %vm285 = vcmask 130048
    %v287 = vsel %vm285, %v278, 0
    %289 = vmatpush.msra.mxu0 0.0
    %290 = vmatpush.msra.mxu0 0.0
    %291 = vmatpush.msra.mxu0 0.0
    %292 = vmatpush.msra.mxu0 0.0
    %293 = vmatpush.msra.mxu0 0.0
    %294 = vmatpush.msra.mxu0 0.0
    %295 = vmatpush.msra.mxu0 0.0
    %296 = vmatpush.msra.mxu0 0.0
    %297 = vmatpush.msra.mxu0 0.0
    %298 = vmatpush.msra.mxu0 0.0
    %299 = vmatpush.msra.mxu0 0.0
    %300 = vmatpush.msra.mxu0 0.0
    %301 = vmatpush.msra.mxu0 0.0
    %302 = vmatpush.msra.mxu0 0.0
    %303 = vmatpush.msra.mxu0 %v277
    %304 = vmatpush.msra.mxu0 %v276
    %305 = vmatmul.f32.gmra.mxu0 %v287
    %v306 = vpop.f32.mrf.mxu0
    %v307 = vadd.f32 %v283, %v306
    %308 = vdwg.mxu0
    %v309 = vlaneseq
    %v310 = vshrl.u32 %v309, 7
    %vm311 = vcmp.lt.s32.totalorder %v310, 4
    %v312 = vxor.u32 %v307, 2147483648
    %v313 = vmul.f32 %v312, 1.442695
    %v314 = vpow.pop %v313
    %v315 = vadd.f32 %v314, 1.0
    %v316 = vrcp.pop %v315
    %v317 = vmul.f32 %v315, %v316
    %v318 = vsub.f32 1.0, %v317
    %v319 = vmul.f32 %v316, %v318
    %v320 = vadd.f32 %v316, %v319
    %vm321 = vweird.f32 %v315
    %vm322 = vweird.f32 %v316
    %vm323 = vmor %vm321, %vm322
    %v324 = vsel %vm323, %v316, %v320
    %v325 = vand.u32 2147483647, %v315
    %vm326 = vcmp.eq.f32.partialorder %v325, 8.507059e+37
    %v327 = vand.u32 %v315, 2147483648
    %v328 = vor.u32 1.1754944e-38, %v327
    %v329 = vsel %vm326, %v328, %v324
    %v330 = vmul.f32 1.0, %v329
    %v331 = vsel %vm311, %v307, %v330
    %332 = vst [vmem:[#allocation2] sm:$0xff] %v331
    %v333 = vld [vmem:[%s1] sm:$0xf]
    %v334 = vmul.f32 %v331, 0.5
    %v335 = vmul.f32 %v334, 1.442695
    %v336 = vpow.pop %v335
    %v338 = vrot.slane %v336, 4
    %v340 = vmul.f32 %v333, %v338
    %v341 = vadd.f32 %v331, %v340
    %v342 = vld [vmem:[%s2 + $0x60] sm:$0xff]
    %v343 = vld [vmem:[%s2 + $0x68] sm:$0xff]
    %v344 = vld [vmem:[%s3 + $0x60] sm:$0xff]
    %v345 = vld [vmem:[%s3 + $0x68] sm:$0xff]
    %347 = vset.pattern.permute.xlu0 0
    %348 = vperm.xlu0 %347, %v344
    %v349 = vpop.permute.xlu0 %348
    %352 = vset.pattern.permute.xlu0 0
    %353 = vperm.xlu0 %352, %v345
    %v354 = vpop.permute.xlu0 %353
    %vm356 = vcmask 31744
    %v358 = vsel %vm356, %v342, 0
    %v361 = vsel %vm356, %v343, 0
    %vm363 = vcmask 1043456
    %v365 = vsel %vm363, %v341, 0
    %367 = vmatpush.msra.mxu0 0.0
    %368 = vmatpush.msra.mxu0 0.0
    %369 = vmatpush.msra.mxu0 0.0
    %370 = vmatpush.msra.mxu0 0.0
    %371 = vmatpush.msra.mxu0 0.0
    %372 = vmatpush.msra.mxu0 0.0
    %373 = vmatpush.msra.mxu0 0.0
    %374 = vmatpush.msra.mxu0 0.0
    %375 = vmatpush.msra.mxu0 0.0
    %376 = vmatpush.msra.mxu0 0.0
    %377 = vmatpush.msra.mxu0 0.0
    %378 = vmatpush.msra.mxu0 0.0
    %379 = vmatpush.msra.mxu0 0.0
    %380 = vmatpush.msra.mxu0 0.0
    %381 = vmatpush.msra.mxu0 0.0
    %382 = vmatpush.msra.mxu0 %v365
    %383 = vmatmul.f32.gmra.mxu0 %v358
    %v384 = vpop.f32.mrf.mxu0
    %v385 = vadd.f32 %v349, %v384
    %386 = vmatmul.f32.gmra.mxu0 %v361
    %v387 = vpop.f32.mrf.mxu0
    %v388 = vadd.f32 %v354, %v387
    %389 = vdwg.mxu0
    %v390 = vmax.f32 %v385, 0.0
    %v391 = vmax.f32 %v388, 0.0
    %v392 = vld [vmem:[%s2 + $0x70] sm:$0xff]
    %v393 = vld [vmem:[%s2 + $0x78] sm:$0xff]
    %v394 = vld [vmem:[%s2 + $0x80] sm:$0xff]
    %v395 = vld [vmem:[%s2 + $0x88] sm:$0xff]
    %v396 = vld [vmem:[%s3 + $0x70] sm:$0xff]
    %v397 = vld [vmem:[%s3 + $0x78] sm:$0xff]
    %v398 = vld [vmem:[%s3 + $0x80] sm:$0xff]
    %v399 = vld [vmem:[%s3 + $0x88] sm:$0xff]
    %401 = vset.pattern.permute.xlu0 0
    %402 = vperm.xlu0 %401, %v396
    %v403 = vpop.permute.xlu0 %402
    %406 = vset.pattern.permute.xlu0 0
    %407 = vperm.xlu0 %406, %v397
    %v408 = vpop.permute.xlu0 %407
    %411 = vset.pattern.permute.xlu0 0
    %412 = vperm.xlu0 %411, %v398
    %v413 = vpop.permute.xlu0 %412
    %416 = vset.pattern.permute.xlu0 0
    %417 = vperm.xlu0 %416, %v399
    %v418 = vpop.permute.xlu0 %417
    %v421 = vsel %vm285, %v392, 0
    %v424 = vsel %vm285, %v393, 0
    %v427 = vsel %vm285, %v394, 0
    %v430 = vsel %vm285, %v395, 0
    %432 = vmatpush.msra.mxu0 0.0
    %433 = vmatpush.msra.mxu0 0.0
    %434 = vmatpush.msra.mxu0 0.0
    %435 = vmatpush.msra.mxu0 0.0
    %436 = vmatpush.msra.mxu0 0.0
    %437 = vmatpush.msra.mxu0 0.0
    %438 = vmatpush.msra.mxu0 0.0
    %439 = vmatpush.msra.mxu0 0.0
    %440 = vmatpush.msra.mxu0 0.0
    %441 = vmatpush.msra.mxu0 0.0
    %442 = vmatpush.msra.mxu0 0.0
    %443 = vmatpush.msra.mxu0 0.0
    %444 = vmatpush.msra.mxu0 0.0
    %445 = vmatpush.msra.mxu0 0.0
    %446 = vmatpush.msra.mxu0 %v391
    %447 = vmatpush.msra.mxu0 %v390
    %448 = vmatmul.f32.gmra.mxu0 %v421
    %v449 = vpop.f32.mrf.mxu0
    %v450 = vadd.f32 %v403, %v449
    %451 = vmatmul.f32.gmra.mxu0 %v424
    %v452 = vpop.f32.mrf.mxu0
    %v453 = vadd.f32 %v408, %v452
    %454 = vmatmul.f32.gmra.mxu0 %v427
    %v455 = vpop.f32.mrf.mxu0
    %v456 = vadd.f32 %v413, %v455
    %457 = vmatmul.f32.gmra.mxu0 %v430
    %v458 = vpop.f32.mrf.mxu0
    %v459 = vadd.f32 %v418, %v458
    %460 = vdwg.mxu0
    %v461 = vmax.f32 %v450, 0.0
    %v462 = vmax.f32 %v453, 0.0
    %v463 = vmax.f32 %v456, 0.0
    %v464 = vmax.f32 %v459, 0.0
    %v465 = vld [vmem:[%s2 + $0x90] sm:$0xff]
    %v466 = vld [vmem:[%s2 + $0x98] sm:$0xff]
    %v467 = vld [vmem:[%s2 + $0xa0] sm:$0xff]
    %v468 = vld [vmem:[%s2 + $0xa8] sm:$0xff]
    %v469 = vld [vmem:[%s3 + $0x90] sm:$0xff]
    %v470 = vld [vmem:[%s3 + $0x98] sm:$0xff]
    %v471 = vld [vmem:[%s3 + $0xa0] sm:$0xff]
    %v472 = vld [vmem:[%s3 + $0xa8] sm:$0xff]
    %474 = vset.pattern.permute.xlu0 0
    %475 = vperm.xlu0 %474, %v469
    %v476 = vpop.permute.xlu0 %475
    %479 = vset.pattern.permute.xlu0 0
    %480 = vperm.xlu0 %479, %v470
    %v481 = vpop.permute.xlu0 %480
    %484 = vset.pattern.permute.xlu0 0
    %485 = vperm.xlu0 %484, %v471
    %v486 = vpop.permute.xlu0 %485
    %489 = vset.pattern.permute.xlu0 0
    %490 = vperm.xlu0 %489, %v472
    %v491 = vpop.permute.xlu0 %490
    %v494 = vsel %vm187, %v465, 0
    %v497 = vsel %vm187, %v466, 0
    %v500 = vsel %vm187, %v467, 0
    %v503 = vsel %vm187, %v468, 0
    %505 = vmatpush.msra.mxu0 0.0
    %506 = vmatpush.msra.mxu0 0.0
    %507 = vmatpush.msra.mxu0 0.0
    %508 = vmatpush.msra.mxu0 0.0
    %509 = vmatpush.msra.mxu0 0.0
    %510 = vmatpush.msra.mxu0 0.0
    %511 = vmatpush.msra.mxu0 0.0
    %512 = vmatpush.msra.mxu0 0.0
    %513 = vmatpush.msra.mxu0 0.0
    %514 = vmatpush.msra.mxu0 0.0
    %515 = vmatpush.msra.mxu0 0.0
    %516 = vmatpush.msra.mxu0 0.0
    %517 = vmatpush.msra.mxu0 %v464
    %518 = vmatpush.msra.mxu0 %v463
    %519 = vmatpush.msra.mxu0 %v462
    %520 = vmatpush.msra.mxu0 %v461
    %521 = vmatmul.f32.gmra.mxu0 %v494
    %v522 = vpop.f32.mrf.mxu0
    %v523 = vadd.f32 %v476, %v522
    %524 = vmatmul.f32.gmra.mxu0 %v497
    %v525 = vpop.f32.mrf.mxu0
    %v526 = vadd.f32 %v481, %v525
    %527 = vmatmul.f32.gmra.mxu0 %v500
    %v528 = vpop.f32.mrf.mxu0
    %v529 = vadd.f32 %v486, %v528
    %530 = vmatmul.f32.gmra.mxu0 %v503
    %v531 = vpop.f32.mrf.mxu0
    %v532 = vadd.f32 %v491, %v531
    %533 = vdwg.mxu0
    %v534 = vmax.f32 %v523, 0.0
    %v535 = vmax.f32 %v526, 0.0
    %v536 = vmax.f32 %v529, 0.0
    %v537 = vmax.f32 %v532, 0.0
    %v538 = vld [vmem:[%s2 + $0xb0] sm:$0xff]
    %v539 = vld [vmem:[%s2 + $0xb8] sm:$0xff]
    %v540 = vld [vmem:[%s3 + $0xb0] sm:$0xff]
    %v541 = vld [vmem:[%s3 + $0xb8] sm:$0xff]
    %543 = vset.pattern.permute.xlu0 0
    %544 = vperm.xlu0 %543, %v540
    %v545 = vpop.permute.xlu0 %544
    %548 = vset.pattern.permute.xlu0 0
    %549 = vperm.xlu0 %548, %v541
    %v550 = vpop.permute.xlu0 %549
    %v553 = vsel %vm187, %v538, 0
    %v556 = vsel %vm187, %v539, 0
    %558 = vmatpush.msra.mxu0 0.0
    %559 = vmatpush.msra.mxu0 0.0
    %560 = vmatpush.msra.mxu0 0.0
    %561 = vmatpush.msra.mxu0 0.0
    %562 = vmatpush.msra.mxu0 0.0
    %563 = vmatpush.msra.mxu0 0.0
    %564 = vmatpush.msra.mxu0 0.0
    %565 = vmatpush.msra.mxu0 0.0
    %566 = vmatpush.msra.mxu0 0.0
    %567 = vmatpush.msra.mxu0 0.0
    %568 = vmatpush.msra.mxu0 0.0
    %569 = vmatpush.msra.mxu0 0.0
    %570 = vmatpush.msra.mxu0 %v537
    %571 = vmatpush.msra.mxu0 %v536
    %572 = vmatpush.msra.mxu0 %v535
    %573 = vmatpush.msra.mxu0 %v534
    %574 = vmatmul.f32.gmra.mxu0 %v553
    %v575 = vpop.f32.mrf.mxu0
    %v576 = vadd.f32 %v545, %v575
    %577 = vmatmul.f32.gmra.mxu0 %v556
    %v578 = vpop.f32.mrf.mxu0
    %v579 = vadd.f32 %v550, %v578
    %580 = vdwg.mxu0
    %581 = vst [vmem:[#allocation4] sm:$0xff] %v576
    %582 = vst [vmem:[#allocation4 + $0x8] sm:$0xff] %v579
    // Predicated region
    $region18: #{tpu_custom_call.1} parent=1 // pred_check
      _
    $region19: #{tpu_custom_call.1} parent=1 // pred_check_branch
      %584 = sbr.rel (0) target = $region21
    $region20: #{tpu_custom_call.1} parent=1 // pred_region
      %586 = vsyncadd [#allocation3], 0
      %s588 = sshll.u32 [#allocation2], 4
      %s589 = int_to_ptr.vmem [resolvable:$true] %s588
      %s590 = sshll.u32 %s4, 4
      %s591 = int_to_ptr.hbm [resolvable:$true] %s590
      %593 = dma.vmem_to_hbm [thread:$0]  %s589, 128, %s591, [#allocation3]
    $region21: #{tpu_custom_call.1} parent=1 // pred_fallthru
      _
    // Predicated region
    $region22: #{tpu_custom_call.1} parent=1 // pred_check
      _
    $region23: #{tpu_custom_call.1} parent=1 // pred_check_branch
      %595 = sbr.rel (0) target = $region25
    $region24: #{tpu_custom_call.1} parent=1 // pred_region
      %597 = vsyncadd [#allocation5], 0
      %s598 = sshll.u32 [#allocation4], 4
      %s599 = int_to_ptr.vmem [resolvable:$true] %s598
      %s600 = sshll.u32 %s5, 4
      %s601 = int_to_ptr.hbm [resolvable:$true] %s600
      %606 = dma.vmem_to_hbm [thread:$0]  %s599, 256, %s601, [#allocation5], 128, 128, 8
    $region25: #{tpu_custom_call.1} parent=1 // pred_fallthru
      _
    // Predicated region
    $region26: #{tpu_custom_call.1} parent=1 // pred_check
      _
    $region27: #{tpu_custom_call.1} parent=1 // pred_check_branch
      %608 = sbr.rel (0) target = $region29
    $region28: #{tpu_custom_call.1} parent=1 // pred_region
      %610 = dma.done [#allocation3], 128
    $region29: #{tpu_custom_call.1} parent=1 // pred_fallthru
      _
    // Predicated region
    $region30: #{tpu_custom_call.1} parent=1 // pred_check
      _
    $region31: #{tpu_custom_call.1} parent=1 // pred_check_branch
      %612 = sbr.rel (0) target = $region33
    $region32: #{tpu_custom_call.1} parent=1 // pred_region
      %614 = dma.done [#allocation5], 256
    $region33: #{tpu_custom_call.1} parent=1 // pred_fallthru
      _
    %615 = vsyncpa [#allocation3], 1
    %616 = vsyncpa [#allocation5], 1

</llo_original>
